<compile_context>
chip_gen: v5e
topology: v5e:2x2
jax: 0.10.0
libtpu: 0.0.40
codegen_flags: <defaults>
</compile_context>

<pallas_src>
import functools
import math

import jax
import jax.numpy as jnp
from jax.experimental import pallas as pl
from jax.experimental.pallas import tpu as pltpu


def _round_up(x, m):
    return ((x + m - 1) // m) * m


def mlp_kernel(x_ref, w_ref, o_ref, *, num_layers, negative_slope):
    # x_ref: (TB, Cp)    pooled activations, channels lane-dense, f32
    # w_ref: (L, Cp, Cp) weights pre-transposed to (in, out); VMEM resident all grid steps
    # o_ref: (TB, Cp)    lane-dense output tile (unmasked vst)
    out = x_ref[...].astype(jnp.float32)                       # f32 elementwise/accum
    for i in range(num_layers):                                 # layers are serial; unroll
        w = w_ref[i]                                            # (Cp, Cp), no transpose
        out = jnp.dot(out.astype(w.dtype), w,
                      preferred_element_type=jnp.float32)       # MXU, f32 accumulation
        out = jnp.where(out > 0, out, negative_slope * out)     # leaky_relu (VPU, f32)
    o_ref[...] = out.astype(o_ref.dtype)


def mlp_forward(x, weights, *, compute_dtype=jnp.bfloat16, block_b=None,
                negative_slope=0.01, vmem_budget_bytes=32 * 1024 * 1024):
    """x: (B, C, S) (PyTorch NCL), weights: (L, C, C) PyTorch Linear layout (out, in).

    Returns (B, C) in x.dtype. compute_dtype (default bf16) is used only for the matmul
    inputs/weights; pooling, accumulation and leaky_relu stay in f32. compute_dtype=None
    keeps everything in f32.
    """
    B, C, S = x.shape
    L, c_out, c_in = weights.shape
    # Zero-padding correctness below relies on square, bias-free hidden layers and on
    # padding only along B / C (never S).
    assert c_out == C and c_in == C, "hidden Linear layers must be (C, C), bias-free"
    out_dtype = x.dtype

    # ---- max_pool1d over the whole sequence, hoisted out of the kernel (one HBM pass,
    # f32, already lane-dense (B, C)) ------------------------------------------------
    pooled = jnp.max(x, axis=-1)                                # (B, C)

    # Weights -> (L, C_in, C_out) once, so the kernel never transposes; bf16 by default.
    w = jnp.transpose(weights, (0, 2, 1))
    if compute_dtype is not None:
        w = w.astype(compute_dtype)

    LANE, SUB = 128, 8
    c_pad = _round_up(C, LANE)

    act_b = jnp.dtype(pooled.dtype).itemsize
    out_b = jnp.dtype(out_dtype).itemsize
    w_b = jnp.dtype(w.dtype).itemsize
    weight_bytes = L * c_pad * c_pad * w_b                      # single weight copy

    # Batch-tile selection from the actual buffer math: double-buffered input + output
    # tiles plus (conservatively 2x) the weight stack must fit the VMEM budget.
    per_row = c_pad * 2 * (act_b + out_b)                       # 2x in + 2x out, per row
    avail = max(vmem_budget_bytes - 2 * weight_bytes, per_row * SUB)
    fit_b = max(SUB, int(avail // per_row) // SUB * SUB)
    if block_b is None:
        block_b = min(fit_b, 1024, _round_up(B, SUB))
        if B > SUB:  # keep >=2 parallel grid steps so both v7x TensorCores get work
            block_b = min(block_b, _round_up(pl.cdiv(B, 2), SUB))
    block_b = max(SUB, _round_up(int(block_b), SUB))
    b_pad = _round_up(B, block_b)

    # Zero padding only along B and C (tiny (B, C) array + weight stack). Exact here:
    # leaky_relu(0) = 0 and padded weight rows/cols are zero, no bias.
    if b_pad != B or c_pad != C:
        pooled = jnp.pad(pooled, ((0, b_pad - B), (0, c_pad - C)))
    if c_pad != C:
        w = jnp.pad(w, ((0, 0), (0, c_pad - C), (0, c_pad - C)))

    grid = (b_pad // block_b,)
    kernel = functools.partial(mlp_kernel, num_layers=L, negative_slope=negative_slope)

    # Raise the scoped-VMEM limit to what the tiles actually need (plus headroom); the
    # auto-selected tiles stay well under v7x's 64 MiB physical budget.
    needed = 2 * weight_bytes + block_b * per_row + (4 << 20)
    vmem_limit = int(min(max(needed, 32 << 20), 100 << 20))

    def run(single_buffer_weights):
        w_kwargs = {"pipeline_mode": pl.Buffered(1)} if single_buffer_weights else {}
        return pl.pallas_call(
            kernel,
            out_shape=jax.ShapeDtypeStruct((b_pad, c_pad), out_dtype),
            grid=grid,
            in_specs=[
                # pooled activation tile marches over the batch
                pl.BlockSpec((block_b, c_pad), lambda b: (b, 0)),
                # whole weight stack, constant block index -> VMEM resident
                pl.BlockSpec((L, c_pad, c_pad), lambda b: (0, 0, 0), **w_kwargs),
            ],
            out_specs=pl.BlockSpec((block_b, c_pad), lambda b: (b, 0)),
            compiler_params=pltpu.CompilerParams(
                dimension_semantics=("parallel",),
                vmem_limit_bytes=vmem_limit,
            ),
        )(pooled, w)

    try:
        # Single-buffer the constant weight block (saves a full weight copy of VMEM).
        out = run(single_buffer_weights=True)
    except Exception:  # pragma: no cover - jax builds without per-spec buffer counts
        out = run(single_buffer_weights=False)

    return out[:B, :C]


def init_weights(key, num_layers, features):
    """torch.nn.Linear default init: U(-1/sqrt(fan_in), 1/sqrt(fan_in)), shape (out, in)."""
    bound = 1.0 / math.sqrt(features)
    keys = jax.random.split(key, num_layers)
    ws = [jax.random.uniform(k, (features, features), jnp.float32, -bound, bound)
          for k in keys]
    return jnp.stack(ws, axis=0)  # (L, C, C)


def mlp_reference(x, weights, negative_slope=0.01):
    """Pure-JAX reference of the PyTorch forward pass (f32)."""
    out = jnp.max(x, axis=-1)
    for i in range(weights.shape[0]):
        out = out @ weights[i].T
        out = jnp.where(out > 0, out, negative_slope * out)
    return out


if __name__ == "__main__":
    key = jax.random.PRNGKey(0)
    kx, kw, kx2 = jax.random.split(key, 3)

    # Shapes implied by the module's forward: x is (B, C, S); hidden Linear width = C.
    B, C, S = 2, 32, 8
    NUM_LAYERS = 3

    x = jax.random.normal(kx, (B, C, S), dtype=jnp.float32)
    weights = init_weights(kw, NUM_LAYERS, C)
    ref = mlp_reference(x, weights)

    # Pure f32 path (exact vs reference)
    out_f32 = jax.block_until_ready(mlp_forward(x, weights, compute_dtype=None))
    assert out_f32.shape == (B, C), out_f32.shape
    assert jnp.allclose(out_f32, ref, atol=1e-5, rtol=1e-5), "f32 mismatch vs reference"

    # Default path: bf16 matmul inputs, f32 pooling/accumulation/leaky_relu
    out_bf16 = jax.block_until_ready(mlp_forward(x, weights))
    assert out_bf16.shape == (B, C), out_bf16.shape
    assert jnp.allclose(out_bf16, ref, atol=1e-1, rtol=1e-1), "bf16 mismatch vs reference"

    # Exercise batch padding + a multi-step ("parallel") grid with a small manual block_b.
    B2 = 19
    x2 = jax.random.normal(kx2, (B2, C, S), dtype=jnp.float32)
    out2 = jax.block_until_ready(mlp_forward(x2, weights, compute_dtype=None, block_b=8))
    ref2 = mlp_reference(x2, weights)
    assert out2.shape == (B2, C), out2.shape
    assert jnp.allclose(out2, ref2, atol=1e-5, rtol=1e-5), "gridded mismatch vs reference"

    # Auto block_b selection (>=2 grid steps when B > 8), default bf16 path.
    out3 = jax.block_until_ready(mlp_forward(x2, weights))
    assert out3.shape == (B2, C), out3.shape
    assert jnp.allclose(out3, ref2, atol=1e-1, rtol=1e-1), "auto-tile mismatch vs reference"

    print("KERNEL_OK")
</pallas_src>

<mosaic_0001>
module attributes {stable_mosaic.version = 11 : i64} {
  func.func @mlp_kernel(%arg0: i32, %arg1: memref<8x128xf32, #tpu.memory_space<vmem>>, %arg2: memref<3x128x128xf32, #tpu.memory_space<vmem>>, %arg3: memref<8x128xf32, #tpu.memory_space<vmem>>) attributes {dimension_semantics = [#tpu.dimension_semantics<parallel>], iteration_bounds = array<i64: 1>, scalar_prefetch = 0 : i64, scratch_operands = 0 : i64, tpu.core_type = #tpu.core_type<tc>, window_params = [{transform_indices = @transform_0, window_bounds = array<i64: 8, 128>}, {pipeline_mode = #tpu.pipeline_mode<synchronous>, transform_indices = @transform_1, window_bounds = array<i64: 3, 128, 128>}, {transform_indices = @transform_2, window_bounds = array<i64: 8, 128>}]} {
    %c0 = arith.constant 0 : index
    %c0_0 = arith.constant 0 : index
    %0 = vector.load %arg1[%c0, %c0_0] : memref<8x128xf32, #tpu.memory_space<vmem>>, vector<8x128xf32>
    %c0_1 = arith.constant 0 : index
    %c0_2 = arith.constant 0 : index
    %c0_3 = arith.constant 0 : index
    %1 = vector.load %arg2[%c0_1, %c0_2, %c0_3] : memref<3x128x128xf32, #tpu.memory_space<vmem>>, vector<1x128x128xf32>
    %2 = vector.shape_cast %1 : vector<1x128x128xf32> to vector<128x128xf32>
    %cst = arith.constant dense<0.000000e+00> : vector<8x128xf32>
    %3 = tpu.matmul %0, %2, %cst {dimension_numbers = #tpu.dot_dimension_numbers<[1], [0], [0], [1], [0, 0, 1, 1], [], []>} : vector<8x128xf32>, vector<128x128xf32>, vector<8x128xf32> -> vector<8x128xf32>
    %cst_4 = arith.constant 0.000000e+00 : f32
    %4 = vector.broadcast %cst_4 : f32 to vector<8x128xf32>
    %5 = arith.cmpf ogt, %3, %4 : vector<8x128xf32>
    %cst_5 = arith.constant 0.00999999977 : f32
    %6 = vector.broadcast %cst_5 : f32 to vector<8x128xf32>
    %7 = arith.mulf %6, %3 : vector<8x128xf32>
    %8 = arith.select %5, %3, %7 : vector<8x128xi1>, vector<8x128xf32>
    %c1 = arith.constant 1 : index
    %c0_6 = arith.constant 0 : index
    %c0_7 = arith.constant 0 : index
    %9 = vector.load %arg2[%c1, %c0_6, %c0_7] : memref<3x128x128xf32, #tpu.memory_space<vmem>>, vector<1x128x128xf32>
    %10 = vector.shape_cast %9 : vector<1x128x128xf32> to vector<128x128xf32>
    %cst_8 = arith.constant dense<0.000000e+00> : vector<8x128xf32>
    %11 = tpu.matmul %8, %10, %cst_8 {dimension_numbers = #tpu.dot_dimension_numbers<[1], [0], [0], [1], [0, 0, 1, 1], [], []>} : vector<8x128xf32>, vector<128x128xf32>, vector<8x128xf32> -> vector<8x128xf32>
    %cst_9 = arith.constant 0.000000e+00 : f32
    %12 = vector.broadcast %cst_9 : f32 to vector<8x128xf32>
    %13 = arith.cmpf ogt, %11, %12 : vector<8x128xf32>
    %cst_10 = arith.constant 0.00999999977 : f32
    %14 = vector.broadcast %cst_10 : f32 to vector<8x128xf32>
    %15 = arith.mulf %14, %11 : vector<8x128xf32>
    %16 = arith.select %13, %11, %15 : vector<8x128xi1>, vector<8x128xf32>
    %c2 = arith.constant 2 : index
    %c0_11 = arith.constant 0 : index
    %c0_12 = arith.constant 0 : index
    %17 = vector.load %arg2[%c2, %c0_11, %c0_12] : memref<3x128x128xf32, #tpu.memory_space<vmem>>, vector<1x128x128xf32>
    %18 = vector.shape_cast %17 : vector<1x128x128xf32> to vector<128x128xf32>
    %cst_13 = arith.constant dense<0.000000e+00> : vector<8x128xf32>
    %19 = tpu.matmul %16, %18, %cst_13 {dimension_numbers = #tpu.dot_dimension_numbers<[1], [0], [0], [1], [0, 0, 1, 1], [], []>} : vector<8x128xf32>, vector<128x128xf32>, vector<8x128xf32> -> vector<8x128xf32>
    %cst_14 = arith.constant 0.000000e+00 : f32
    %20 = vector.broadcast %cst_14 : f32 to vector<8x128xf32>
    %21 = arith.cmpf ogt, %19, %20 : vector<8x128xf32>
    %cst_15 = arith.constant 0.00999999977 : f32
    %22 = vector.broadcast %cst_15 : f32 to vector<8x128xf32>
    %23 = arith.mulf %22, %19 : vector<8x128xf32>
    %24 = arith.select %21, %19, %23 : vector<8x128xi1>, vector<8x128xf32>
    %c0_16 = arith.constant 0 : index
    %c0_17 = arith.constant 0 : index
    %25 = vector.load %arg3[%c0_16, %c0_17] : memref<8x128xf32, #tpu.memory_space<vmem>>, vector<8x128xf32>
    tpu.vector_store %arg3[%c0_16, %c0_17], %24 {strides = array<i32>} : memref<8x128xf32, #tpu.memory_space<vmem>>, vector<8x128xf32>,
    return
  }
  func.func @transform_0(%arg0: i32) -> (i32, i32) {
    %c0_i32 = arith.constant 0 : i32
    %c0_i32_0 = arith.constant 0 : i32
    return %arg0, %c0_i32 : i32, i32
  }
  func.func @transform_1(%arg0: i32) -> (i32, i32, i32) {
    %c0_i32 = arith.constant 0 : i32
    %c0_i32_0 = arith.constant 0 : i32
    %c0_i32_1 = arith.constant 0 : i32
    %c0_i32_2 = arith.constant 0 : i32
    return %c0_i32, %c0_i32_0, %c0_i32_1 : i32, i32, i32
  }
  func.func @transform_2(%arg0: i32) -> (i32, i32) {
    %c0_i32 = arith.constant 0 : i32
    %c0_i32_0 = arith.constant 0 : i32
    return %arg0, %c0_i32 : i32, i32
  }
}

module attributes {stable_mosaic.version = 11 : i64} {
  func.func @mlp_kernel(%arg0: i32, %arg1: memref<8x128xf32, #tpu.memory_space<vmem>>, %arg2: memref<3x128x128xf32, #tpu.memory_space<vmem>>, %arg3: memref<8x128xf32, #tpu.memory_space<vmem>>) attributes {dimension_semantics = [#tpu.dimension_semantics<parallel>], iteration_bounds = array<i64: 1>, scalar_prefetch = 0 : i64, scratch_operands = 0 : i64, tpu.core_type = #tpu.core_type<tc>, window_params = [{transform_indices = @transform_0, window_bounds = array<i64: 8, 128>}, {pipeline_mode = #tpu.pipeline_mode<synchronous>, transform_indices = @transform_1, window_bounds = array<i64: 3, 128, 128>}, {transform_indices = @transform_2, window_bounds = array<i64: 8, 128>}]} {
    %c0 = arith.constant 0 : index
    %c0_0 = arith.constant 0 : index
    %0 = vector.load %arg1[%c0, %c0_0] : memref<8x128xf32, #tpu.memory_space<vmem>>, vector<8x128xf32>
    %c0_1 = arith.constant 0 : index
    %c0_2 = arith.constant 0 : index
    %c0_3 = arith.constant 0 : index
    %1 = vector.load %arg2[%c0_1, %c0_2, %c0_3] : memref<3x128x128xf32, #tpu.memory_space<vmem>>, vector<1x128x128xf32>
    %2 = vector.shape_cast %1 : vector<1x128x128xf32> to vector<128x128xf32>
    %cst = arith.constant dense<0.000000e+00> : vector<8x128xf32>
    %3 = tpu.matmul %0, %2, %cst {dimension_numbers = #tpu.dot_dimension_numbers<[1], [0], [0], [1], [0, 0, 1, 1], [], []>} : vector<8x128xf32>, vector<128x128xf32>, vector<8x128xf32> -> vector<8x128xf32>
    %cst_4 = arith.constant 0.000000e+00 : f32
    %4 = vector.broadcast %cst_4 : f32 to vector<8x128xf32>
    %5 = arith.cmpf ogt, %3, %4 : vector<8x128xf32>
    %cst_5 = arith.constant 0.00999999977 : f32
    %6 = vector.broadcast %cst_5 : f32 to vector<8x128xf32>
    %7 = arith.mulf %6, %3 : vector<8x128xf32>
    %8 = arith.select %5, %3, %7 : vector<8x128xi1>, vector<8x128xf32>
    %c1 = arith.constant 1 : index
    %c0_6 = arith.constant 0 : index
    %c0_7 = arith.constant 0 : index
    %9 = vector.load %arg2[%c1, %c0_6, %c0_7] : memref<3x128x128xf32, #tpu.memory_space<vmem>>, vector<1x128x128xf32>
    %10 = vector.shape_cast %9 : vector<1x128x128xf32> to vector<128x128xf32>
    %cst_8 = arith.constant dense<0.000000e+00> : vector<8x128xf32>
    %11 = tpu.matmul %8, %10, %cst_8 {dimension_numbers = #tpu.dot_dimension_numbers<[1], [0], [0], [1], [0, 0, 1, 1], [], []>} : vector<8x128xf32>, vector<128x128xf32>, vector<8x128xf32> -> vector<8x128xf32>
    %cst_9 = arith.constant 0.000000e+00 : f32
    %12 = vector.broadcast %cst_9 : f32 to vector<8x128xf32>
    %13 = arith.cmpf ogt, %11, %12 : vector<8x128xf32>
    %cst_10 = arith.constant 0.00999999977 : f32
    %14 = vector.broadcast %cst_10 : f32 to vector<8x128xf32>
    %15 = arith.mulf %14, %11 : vector<8x128xf32>
    %16 = arith.select %13, %11, %15 : vector<8x128xi1>, vector<8x128xf32>
    %c2 = arith.constant 2 : index
    %c0_11 = arith.constant 0 : index
    %c0_12 = arith.constant 0 : index
    %17 = vector.load %arg2[%c2, %c0_11, %c0_12] : memref<3x128x128xf32, #tpu.memory_space<vmem>>, vector<1x128x128xf32>
    %18 = vector.shape_cast %17 : vector<1x128x128xf32> to vector<128x128xf32>
    %cst_13 = arith.constant dense<0.000000e+00> : vector<8x128xf32>
    %19 = tpu.matmul %16, %18, %cst_13 {dimension_numbers = #tpu.dot_dimension_numbers<[1], [0], [0], [1], [0, 0, 1, 1], [], []>} : vector<8x128xf32>, vector<128x128xf32>, vector<8x128xf32> -> vector<8x128xf32>
    %cst_14 = arith.constant 0.000000e+00 : f32
    %20 = vector.broadcast %cst_14 : f32 to vector<8x128xf32>
    %21 = arith.cmpf ogt, %19, %20 : vector<8x128xf32>
    %cst_15 = arith.constant 0.00999999977 : f32
    %22 = vector.broadcast %cst_15 : f32 to vector<8x128xf32>
    %23 = arith.mulf %22, %19 : vector<8x128xf32>
    %24 = arith.select %21, %19, %23 : vector<8x128xi1>, vector<8x128xf32>
    %c0_16 = arith.constant 0 : index
    %c0_17 = arith.constant 0 : index
    %25 = vector.load %arg3[%c0_16, %c0_17] : memref<8x128xf32, #tpu.memory_space<vmem>>, vector<8x128xf32>
    tpu.vector_store %arg3[%c0_16, %c0_17], %24 {strides = array<i32>} : memref<8x128xf32, #tpu.memory_space<vmem>>, vector<8x128xf32>,
    return
  }
  func.func @transform_0(%arg0: i32) -> (i32, i32) {
    %c0_i32 = arith.constant 0 : i32
    %c0_i32_0 = arith.constant 0 : i32
    return %arg0, %c0_i32 : i32, i32
  }
  func.func @transform_1(%arg0: i32) -> (i32, i32, i32) {
    %c0_i32 = arith.constant 0 : i32
    %c0_i32_0 = arith.constant 0 : i32
    %c0_i32_1 = arith.constant 0 : i32
    %c0_i32_2 = arith.constant 0 : i32
    return %c0_i32, %c0_i32_0, %c0_i32_1 : i32, i32, i32
  }
  func.func @transform_2(%arg0: i32) -> (i32, i32) {
    %c0_i32 = arith.constant 0 : i32
    %c0_i32_0 = arith.constant 0 : i32
    return %arg0, %c0_i32 : i32, i32
  }
}

</mosaic_0001>

<llo_original>
// kernel: tpu_custom_call.1
$region0: #{tpu_custom_call.1}
  #allocation0 [shape = 'u32[]', space=smem, size = 0x4, offset = 0x4, fixed_abs, tag = 'smem constant byte address 0x4 - core index']
  #allocation1 [shape = 'u32[72,128]{1,0:T(1,128)}', space=vmem, size = 0x9000, scoped, tag = 'internal scratch']
  %s0 = inlined_call_operand.hbm [shape: f32[8,128], index: 0, kind: input, shape index: {}]
  %s1 = inlined_call_operand.hbm [shape: f32[3,128,128], index: 1, kind: input, shape index: {}]
  %s2 = inlined_call_operand.hbm [shape: f32[8,128], index: 2, kind: output, shape index: {}]
  %s3 = sld [smem:[#allocation0]]
  $region26: #{tpu_custom_call.1} parent=0
    _
  %s5 = ssub.s32 1, %s3
  %s6 = scalar_select 0, %s5, %s3
  $region1: #{tpu_custom_call.1} parent=0
    #allocation2 [shape = 'u8[4096]{0}', space=vmem, size = 0x1000, scoped, tag = 'input window, operand 0, single buffered']
    #allocation3 [shape = 's32[1]{0}', space=sflag, size = 0x4, scoped, tag = 'scoped memory for tpu_custom_call.1']
    #allocation4 [shape = 's32[1]{0}', space=sflag, size = 0x4, scoped, tag = 'scoped memory for tpu_custom_call.1']
    #allocation5 [shape = 'u8[196608]{0}', space=vmem, size = 0x30000, scoped, tag = 'input window, operand 1, single buffered']
    #allocation6 [shape = 's32[1]{0}', space=sflag, size = 0x4, scoped, tag = 'scoped memory for tpu_custom_call.1']
    #allocation7 [shape = 'u8[4096]{0}', space=vmem, size = 0x1000, scoped, tag = 'output window, operand 0, single buffered']
    %7 = vsyncpa [#allocation3], 0
    %8 = vsyncpa [#allocation6], 0
    %9 = vsyncpa [#allocation4], 0
    // Predicated region
    $region2: #{tpu_custom_call.1} parent=1 // pred_check
      _
    $region3: #{tpu_custom_call.1} parent=1 // pred_check_branch
      %11 = sbr.rel (0) target = $region5
    $region4: #{tpu_custom_call.1} parent=1 // pred_region
      %13 = vsyncadd [#allocation3], 0
      %s15 = sshll.u32 %s0, 4
      %s16 = int_to_ptr.hbm [resolvable:$true] %s15
      %s17 = sshll.u32 [#allocation2], 4
      %s18 = int_to_ptr.vmem [resolvable:$true] %s17
      %20 = dma.hbm_to_vmem [thread:$0]  %s16, 128, %s18, [#allocation3]
    $region5: #{tpu_custom_call.1} parent=1 // pred_fallthru
      _
    // Predicated region
    $region6: #{tpu_custom_call.1} parent=1 // pred_check
      _
    $region7: #{tpu_custom_call.1} parent=1 // pred_check_branch
      %22 = sbr.rel (0) target = $region9
    $region8: #{tpu_custom_call.1} parent=1 // pred_region
      %24 = vsyncadd [#allocation6], 0
      %s25 = sshll.u32 %s1, 4
      %s26 = int_to_ptr.hbm [resolvable:$true] %s25
      %s27 = sshll.u32 [#allocation5], 4
      %s28 = int_to_ptr.vmem [resolvable:$true] %s27
      %33 = dma.hbm_to_vmem [thread:$0]  %s26, 6144, %s28, [#allocation6], 128, 128, 8
    $region9: #{tpu_custom_call.1} parent=1 // pred_fallthru
      _
    // Predicated region
    $region10: #{tpu_custom_call.1} parent=1 // pred_check
      _
    $region11: #{tpu_custom_call.1} parent=1 // pred_check_branch
      %35 = sbr.rel (0) target = $region13
    $region12: #{tpu_custom_call.1} parent=1 // pred_region
      %37 = dma.done [#allocation3], 128
    $region13: #{tpu_custom_call.1} parent=1 // pred_fallthru
      _
    // Predicated region
    $region14: #{tpu_custom_call.1} parent=1 // pred_check
      _
    $region15: #{tpu_custom_call.1} parent=1 // pred_check_branch
      %39 = sbr.rel (0) target = $region17
    $region16: #{tpu_custom_call.1} parent=1 // pred_region
      %41 = dma.done [#allocation6], 6144
    $region17: #{tpu_custom_call.1} parent=1 // pred_fallthru
      _
    %v42 = vld [vmem:[#allocation2] sm:$0xff]
    %v43 = vld [vmem:[#allocation5] sm:$0xff]
    %v44 = vld [vmem:[#allocation5 + $0x8] sm:$0xff]
    %v45 = vld [vmem:[#allocation5 + $0x10] sm:$0xff]
    %v46 = vld [vmem:[#allocation5 + $0x18] sm:$0xff]
    %v47 = vld [vmem:[#allocation5 + $0x20] sm:$0xff]
    %v48 = vld [vmem:[#allocation5 + $0x28] sm:$0xff]
    %v49 = vld [vmem:[#allocation5 + $0x30] sm:$0xff]
    %v50 = vld [vmem:[#allocation5 + $0x38] sm:$0xff]
    %v51 = vld [vmem:[#allocation5 + $0x40] sm:$0xff]
    %v52 = vld [vmem:[#allocation5 + $0x48] sm:$0xff]
    %v53 = vld [vmem:[#allocation5 + $0x50] sm:$0xff]
    %v54 = vld [vmem:[#allocation5 + $0x58] sm:$0xff]
    %v55 = vld [vmem:[#allocation5 + $0x60] sm:$0xff]
    %v56 = vld [vmem:[#allocation5 + $0x68] sm:$0xff]
    %v57 = vld [vmem:[#allocation5 + $0x70] sm:$0xff]
    %v58 = vld [vmem:[#allocation5 + $0x78] sm:$0xff]
    %59 = vmatpush.msra.mxu0 %v58
    %60 = vmatpush.msra.mxu0 %v57
    %61 = vmatpush.msra.mxu0 %v56
    %62 = vmatpush.msra.mxu0 %v55
    %63 = vmatpush.msra.mxu0 %v54
    %64 = vmatpush.msra.mxu0 %v53
    %65 = vmatpush.msra.mxu0 %v52
    %66 = vmatpush.msra.mxu0 %v51
    %67 = vmatpush.msra.mxu0 %v50
    %68 = vmatpush.msra.mxu0 %v49
    %69 = vmatpush.msra.mxu0 %v48
    %70 = vmatpush.msra.mxu0 %v47
    %71 = vmatpush.msra.mxu0 %v46
    %72 = vmatpush.msra.mxu0 %v45
    %73 = vmatpush.msra.mxu0 %v44
    %74 = vmatpush.msra.mxu0 %v43
    %75 = vmatmul.f32.gmra.mxu0 %v42
    %v76 = vpop.f32.mrf.mxu0
    %v77 = vadd.f32 0.0, %v76
    %78 = vdwg.mxu0
    %vm79 = vcmp.gt.f32.partialorder %v77, 0.0
    %v80 = vmul.f32 %v77, 0.01
    %v81 = vsel %vm79, %v77, %v80
    %s82 = scalar_lea.vmem [#allocation5], 128
    %v83 = vld [vmem:[%s82] sm:$0xff]
    %v84 = vld [vmem:[%s82 + $0x8] sm:$0xff]
    %v85 = vld [vmem:[%s82 + $0x10] sm:$0xff]
    %v86 = vld [vmem:[%s82 + $0x18] sm:$0xff]
    %v87 = vld [vmem:[%s82 + $0x20] sm:$0xff]
    %v88 = vld [vmem:[%s82 + $0x28] sm:$0xff]
    %v89 = vld [vmem:[%s82 + $0x30] sm:$0xff]
    %v90 = vld [vmem:[%s82 + $0x38] sm:$0xff]
    %v91 = vld [vmem:[%s82 + $0x40] sm:$0xff]
    %v92 = vld [vmem:[%s82 + $0x48] sm:$0xff]
    %v93 = vld [vmem:[%s82 + $0x50] sm:$0xff]
    %v94 = vld [vmem:[%s82 + $0x58] sm:$0xff]
    %v95 = vld [vmem:[%s82 + $0x60] sm:$0xff]
    %v96 = vld [vmem:[%s82 + $0x68] sm:$0xff]
    %v97 = vld [vmem:[%s82 + $0x70] sm:$0xff]
    %v98 = vld [vmem:[%s82 + $0x78] sm:$0xff]
    %99 = vmatpush.msra.mxu0 %v98
    %100 = vmatpush.msra.mxu0 %v97
    %101 = vmatpush.msra.mxu0 %v96
    %102 = vmatpush.msra.mxu0 %v95
    %103 = vmatpush.msra.mxu0 %v94
    %104 = vmatpush.msra.mxu0 %v93
    %105 = vmatpush.msra.mxu0 %v92
    %106 = vmatpush.msra.mxu0 %v91
    %107 = vmatpush.msra.mxu0 %v90
    %108 = vmatpush.msra.mxu0 %v89
    %109 = vmatpush.msra.mxu0 %v88
    %110 = vmatpush.msra.mxu0 %v87
    %111 = vmatpush.msra.mxu0 %v86
    %112 = vmatpush.msra.mxu0 %v85
    %113 = vmatpush.msra.mxu0 %v84
    %114 = vmatpush.msra.mxu0 %v83
    %115 = vmatmul.f32.gmra.mxu0 %v81
    %v116 = vpop.f32.mrf.mxu0
    %v117 = vadd.f32 0.0, %v116
    %118 = vdwg.mxu0
    %vm119 = vcmp.gt.f32.partialorder %v117, 0.0
    %v120 = vmul.f32 %v117, 0.01
    %v121 = vsel %vm119, %v117, %v120
    %s122 = scalar_lea.vmem [#allocation5], 256
    %v123 = vld [vmem:[%s122] sm:$0xff]
    %v124 = vld [vmem:[%s122 + $0x8] sm:$0xff]
    %v125 = vld [vmem:[%s122 + $0x10] sm:$0xff]
    %v126 = vld [vmem:[%s122 + $0x18] sm:$0xff]
    %v127 = vld [vmem:[%s122 + $0x20] sm:$0xff]
    %v128 = vld [vmem:[%s122 + $0x28] sm:$0xff]
    %v129 = vld [vmem:[%s122 + $0x30] sm:$0xff]
    %v130 = vld [vmem:[%s122 + $0x38] sm:$0xff]
    %v131 = vld [vmem:[%s122 + $0x40] sm:$0xff]
    %v132 = vld [vmem:[%s122 + $0x48] sm:$0xff]
    %v133 = vld [vmem:[%s122 + $0x50] sm:$0xff]
    %v134 = vld [vmem:[%s122 + $0x58] sm:$0xff]
    %v135 = vld [vmem:[%s122 + $0x60] sm:$0xff]
    %v136 = vld [vmem:[%s122 + $0x68] sm:$0xff]
    %v137 = vld [vmem:[%s122 + $0x70] sm:$0xff]
    %v138 = vld [vmem:[%s122 + $0x78] sm:$0xff]
    %139 = vmatpush.msra.mxu0 %v138
    %140 = vmatpush.msra.mxu0 %v137
    %141 = vmatpush.msra.mxu0 %v136
    %142 = vmatpush.msra.mxu0 %v135
    %143 = vmatpush.msra.mxu0 %v134
    %144 = vmatpush.msra.mxu0 %v133
    %145 = vmatpush.msra.mxu0 %v132
    %146 = vmatpush.msra.mxu0 %v131
    %147 = vmatpush.msra.mxu0 %v130
    %148 = vmatpush.msra.mxu0 %v129
    %149 = vmatpush.msra.mxu0 %v128
    %150 = vmatpush.msra.mxu0 %v127
    %151 = vmatpush.msra.mxu0 %v126
    %152 = vmatpush.msra.mxu0 %v125
    %153 = vmatpush.msra.mxu0 %v124
    %154 = vmatpush.msra.mxu0 %v123
    %155 = vmatmul.f32.gmra.mxu0 %v121
    %v156 = vpop.f32.mrf.mxu0
    %v157 = vadd.f32 0.0, %v156
    %158 = vdwg.mxu0
    %vm159 = vcmp.gt.f32.partialorder %v157, 0.0
    %v160 = vmul.f32 %v157, 0.01
    %v161 = vsel %vm159, %v157, %v160
    %162 = vst [vmem:[#allocation7] sm:$0xff] %v161
    // Predicated region
    $region18: #{tpu_custom_call.1} parent=1 // pred_check
      _
    $region19: #{tpu_custom_call.1} parent=1 // pred_check_branch
      %164 = sbr.rel (0) target = $region21
    $region20: #{tpu_custom_call.1} parent=1 // pred_region
      %166 = vsyncadd [#allocation4], 0
      %s168 = sshll.u32 [#allocation7], 4
      %s169 = int_to_ptr.vmem [resolvable:$true] %s168
      %s170 = sshll.u32 %s2, 4
      %s171 = int_to_ptr.hbm [resolvable:$true] %s170
      %173 = dma.vmem_to_hbm [thread:$0]  %s169, 128, %s171, [#allocation4]
    $region21: #{tpu_custom_call.1} parent=1 // pred_fallthru
      _
    // Predicated region
    $region22: #{tpu_custom_call.1} parent=1 // pred_check
      _
    $region23: #{tpu_custom_call.1} parent=1 // pred_check_branch
      %175 = sbr.rel (0) target = $region25
    $region24: #{tpu_custom_call.1} parent=1 // pred_region
      %177 = dma.done [#allocation4], 128
    $region25: #{tpu_custom_call.1} parent=1 // pred_fallthru
      _
    %178 = vsyncpa [#allocation3], 1
    %179 = vsyncpa [#allocation6], 1
    %180 = vsyncpa [#allocation4], 1

// kernel: tpu_custom_call.1
$region0: #{tpu_custom_call.1}
  #allocation0 [shape = 'u32[]', space=smem, size = 0x4, offset = 0x4, fixed_abs, tag = 'smem constant byte address 0x4 - core index']
  #allocation1 [shape = 'u32[72,128]{1,0:T(1,128)}', space=vmem, size = 0x9000, scoped, tag = 'internal scratch']
  %s0 = inlined_call_operand.hbm [shape: f32[8,128], index: 0, kind: input, shape index: {}]
  %s1 = inlined_call_operand.hbm [shape: f32[3,128,128], index: 1, kind: input, shape index: {}]
  %s2 = inlined_call_operand.hbm [shape: f32[8,128], index: 2, kind: output, shape index: {}]
  %s3 = sld [smem:[#allocation0]]
  $region26: #{tpu_custom_call.1} parent=0
    _
  %s5 = ssub.s32 1, %s3
  %s6 = scalar_select 0, %s5, %s3
  $region1: #{tpu_custom_call.1} parent=0
    #allocation2 [shape = 'u8[4096]{0}', space=vmem, size = 0x1000, scoped, tag = 'input window, operand 0, single buffered']
    #allocation3 [shape = 's32[1]{0}', space=sflag, size = 0x4, scoped, tag = 'scoped memory for tpu_custom_call.1']
    #allocation4 [shape = 's32[1]{0}', space=sflag, size = 0x4, scoped, tag = 'scoped memory for tpu_custom_call.1']
    #allocation5 [shape = 'u8[196608]{0}', space=vmem, size = 0x30000, scoped, tag = 'input window, operand 1, single buffered']
    #allocation6 [shape = 's32[1]{0}', space=sflag, size = 0x4, scoped, tag = 'scoped memory for tpu_custom_call.1']
    #allocation7 [shape = 'u8[4096]{0}', space=vmem, size = 0x1000, scoped, tag = 'output window, operand 0, single buffered']
    %7 = vsyncpa [#allocation3], 0
    %8 = vsyncpa [#allocation6], 0
    %9 = vsyncpa [#allocation4], 0
    // Predicated region
    $region2: #{tpu_custom_call.1} parent=1 // pred_check
      _
    $region3: #{tpu_custom_call.1} parent=1 // pred_check_branch
      %11 = sbr.rel (0) target = $region5
    $region4: #{tpu_custom_call.1} parent=1 // pred_region
      %13 = vsyncadd [#allocation3], 0
      %s15 = sshll.u32 %s0, 4
      %s16 = int_to_ptr.hbm [resolvable:$true] %s15
      %s17 = sshll.u32 [#allocation2], 4
      %s18 = int_to_ptr.vmem [resolvable:$true] %s17
      %20 = dma.hbm_to_vmem [thread:$0]  %s16, 128, %s18, [#allocation3]
    $region5: #{tpu_custom_call.1} parent=1 // pred_fallthru
      _
    // Predicated region
    $region6: #{tpu_custom_call.1} parent=1 // pred_check
      _
    $region7: #{tpu_custom_call.1} parent=1 // pred_check_branch
      %22 = sbr.rel (0) target = $region9
    $region8: #{tpu_custom_call.1} parent=1 // pred_region
      %24 = vsyncadd [#allocation6], 0
      %s25 = sshll.u32 %s1, 4
      %s26 = int_to_ptr.hbm [resolvable:$true] %s25
      %s27 = sshll.u32 [#allocation5], 4
      %s28 = int_to_ptr.vmem [resolvable:$true] %s27
      %33 = dma.hbm_to_vmem [thread:$0]  %s26, 6144, %s28, [#allocation6], 128, 128, 8
    $region9: #{tpu_custom_call.1} parent=1 // pred_fallthru
      _
    // Predicated region
    $region10: #{tpu_custom_call.1} parent=1 // pred_check
      _
    $region11: #{tpu_custom_call.1} parent=1 // pred_check_branch
      %35 = sbr.rel (0) target = $region13
    $region12: #{tpu_custom_call.1} parent=1 // pred_region
      %37 = dma.done [#allocation3], 128
    $region13: #{tpu_custom_call.1} parent=1 // pred_fallthru
      _
    // Predicated region
    $region14: #{tpu_custom_call.1} parent=1 // pred_check
      _
    $region15: #{tpu_custom_call.1} parent=1 // pred_check_branch
      %39 = sbr.rel (0) target = $region17
    $region16: #{tpu_custom_call.1} parent=1 // pred_region
      %41 = dma.done [#allocation6], 6144
    $region17: #{tpu_custom_call.1} parent=1 // pred_fallthru
      _
    %v42 = vld [vmem:[#allocation2] sm:$0xff]
    %v43 = vld [vmem:[#allocation5] sm:$0xff]
    %v44 = vld [vmem:[#allocation5 + $0x8] sm:$0xff]
    %v45 = vld [vmem:[#allocation5 + $0x10] sm:$0xff]
    %v46 = vld [vmem:[#allocation5 + $0x18] sm:$0xff]
    %v47 = vld [vmem:[#allocation5 + $0x20] sm:$0xff]
    %v48 = vld [vmem:[#allocation5 + $0x28] sm:$0xff]
    %v49 = vld [vmem:[#allocation5 + $0x30] sm:$0xff]
    %v50 = vld [vmem:[#allocation5 + $0x38] sm:$0xff]
    %v51 = vld [vmem:[#allocation5 + $0x40] sm:$0xff]
    %v52 = vld [vmem:[#allocation5 + $0x48] sm:$0xff]
    %v53 = vld [vmem:[#allocation5 + $0x50] sm:$0xff]
    %v54 = vld [vmem:[#allocation5 + $0x58] sm:$0xff]
    %v55 = vld [vmem:[#allocation5 + $0x60] sm:$0xff]
    %v56 = vld [vmem:[#allocation5 + $0x68] sm:$0xff]
    %v57 = vld [vmem:[#allocation5 + $0x70] sm:$0xff]
    %v58 = vld [vmem:[#allocation5 + $0x78] sm:$0xff]
    %59 = vmatpush.msra.mxu0 %v58
    %60 = vmatpush.msra.mxu0 %v57
    %61 = vmatpush.msra.mxu0 %v56
    %62 = vmatpush.msra.mxu0 %v55
    %63 = vmatpush.msra.mxu0 %v54
    %64 = vmatpush.msra.mxu0 %v53
    %65 = vmatpush.msra.mxu0 %v52
    %66 = vmatpush.msra.mxu0 %v51
    %67 = vmatpush.msra.mxu0 %v50
    %68 = vmatpush.msra.mxu0 %v49
    %69 = vmatpush.msra.mxu0 %v48
    %70 = vmatpush.msra.mxu0 %v47
    %71 = vmatpush.msra.mxu0 %v46
    %72 = vmatpush.msra.mxu0 %v45
    %73 = vmatpush.msra.mxu0 %v44
    %74 = vmatpush.msra.mxu0 %v43
    %75 = vmatmul.f32.gmra.mxu0 %v42
    %v76 = vpop.f32.mrf.mxu0
    %v77 = vadd.f32 0.0, %v76
    %78 = vdwg.mxu0
    %vm79 = vcmp.gt.f32.partialorder %v77, 0.0
    %v80 = vmul.f32 %v77, 0.01
    %v81 = vsel %vm79, %v77, %v80
    %s82 = scalar_lea.vmem [#allocation5], 128
    %v83 = vld [vmem:[%s82] sm:$0xff]
    %v84 = vld [vmem:[%s82 + $0x8] sm:$0xff]
    %v85 = vld [vmem:[%s82 + $0x10] sm:$0xff]
    %v86 = vld [vmem:[%s82 + $0x18] sm:$0xff]
    %v87 = vld [vmem:[%s82 + $0x20] sm:$0xff]
    %v88 = vld [vmem:[%s82 + $0x28] sm:$0xff]
    %v89 = vld [vmem:[%s82 + $0x30] sm:$0xff]
    %v90 = vld [vmem:[%s82 + $0x38] sm:$0xff]
    %v91 = vld [vmem:[%s82 + $0x40] sm:$0xff]
    %v92 = vld [vmem:[%s82 + $0x48] sm:$0xff]
    %v93 = vld [vmem:[%s82 + $0x50] sm:$0xff]
    %v94 = vld [vmem:[%s82 + $0x58] sm:$0xff]
    %v95 = vld [vmem:[%s82 + $0x60] sm:$0xff]
    %v96 = vld [vmem:[%s82 + $0x68] sm:$0xff]
    %v97 = vld [vmem:[%s82 + $0x70] sm:$0xff]
    %v98 = vld [vmem:[%s82 + $0x78] sm:$0xff]
    %99 = vmatpush.msra.mxu0 %v98
    %100 = vmatpush.msra.mxu0 %v97
    %101 = vmatpush.msra.mxu0 %v96
    %102 = vmatpush.msra.mxu0 %v95
    %103 = vmatpush.msra.mxu0 %v94
    %104 = vmatpush.msra.mxu0 %v93
    %105 = vmatpush.msra.mxu0 %v92
    %106 = vmatpush.msra.mxu0 %v91
    %107 = vmatpush.msra.mxu0 %v90
    %108 = vmatpush.msra.mxu0 %v89
    %109 = vmatpush.msra.mxu0 %v88
    %110 = vmatpush.msra.mxu0 %v87
    %111 = vmatpush.msra.mxu0 %v86
    %112 = vmatpush.msra.mxu0 %v85
    %113 = vmatpush.msra.mxu0 %v84
    %114 = vmatpush.msra.mxu0 %v83
    %115 = vmatmul.f32.gmra.mxu0 %v81
    %v116 = vpop.f32.mrf.mxu0
    %v117 = vadd.f32 0.0, %v116
    %118 = vdwg.mxu0
    %vm119 = vcmp.gt.f32.partialorder %v117, 0.0
    %v120 = vmul.f32 %v117, 0.01
    %v121 = vsel %vm119, %v117, %v120
    %s122 = scalar_lea.vmem [#allocation5], 256
    %v123 = vld [vmem:[%s122] sm:$0xff]
    %v124 = vld [vmem:[%s122 + $0x8] sm:$0xff]
    %v125 = vld [vmem:[%s122 + $0x10] sm:$0xff]
    %v126 = vld [vmem:[%s122 + $0x18] sm:$0xff]
    %v127 = vld [vmem:[%s122 + $0x20] sm:$0xff]
    %v128 = vld [vmem:[%s122 + $0x28] sm:$0xff]
    %v129 = vld [vmem:[%s122 + $0x30] sm:$0xff]
    %v130 = vld [vmem:[%s122 + $0x38] sm:$0xff]
    %v131 = vld [vmem:[%s122 + $0x40] sm:$0xff]
    %v132 = vld [vmem:[%s122 + $0x48] sm:$0xff]
    %v133 = vld [vmem:[%s122 + $0x50] sm:$0xff]
    %v134 = vld [vmem:[%s122 + $0x58] sm:$0xff]
    %v135 = vld [vmem:[%s122 + $0x60] sm:$0xff]
    %v136 = vld [vmem:[%s122 + $0x68] sm:$0xff]
    %v137 = vld [vmem:[%s122 + $0x70] sm:$0xff]
    %v138 = vld [vmem:[%s122 + $0x78] sm:$0xff]
    %139 = vmatpush.msra.mxu0 %v138
    %140 = vmatpush.msra.mxu0 %v137
    %141 = vmatpush.msra.mxu0 %v136
    %142 = vmatpush.msra.mxu0 %v135
    %143 = vmatpush.msra.mxu0 %v134
    %144 = vmatpush.msra.mxu0 %v133
    %145 = vmatpush.msra.mxu0 %v132
    %146 = vmatpush.msra.mxu0 %v131
    %147 = vmatpush.msra.mxu0 %v130
    %148 = vmatpush.msra.mxu0 %v129
    %149 = vmatpush.msra.mxu0 %v128
    %150 = vmatpush.msra.mxu0 %v127
    %151 = vmatpush.msra.mxu0 %v126
    %152 = vmatpush.msra.mxu0 %v125
    %153 = vmatpush.msra.mxu0 %v124
    %154 = vmatpush.msra.mxu0 %v123
    %155 = vmatmul.f32.gmra.mxu0 %v121
    %v156 = vpop.f32.mrf.mxu0
    %v157 = vadd.f32 0.0, %v156
    %158 = vdwg.mxu0
    %vm159 = vcmp.gt.f32.partialorder %v157, 0.0
    %v160 = vmul.f32 %v157, 0.01
    %v161 = vsel %vm159, %v157, %v160
    %162 = vst [vmem:[#allocation7] sm:$0xff] %v161
    // Predicated region
    $region18: #{tpu_custom_call.1} parent=1 // pred_check
      _
    $region19: #{tpu_custom_call.1} parent=1 // pred_check_branch
      %164 = sbr.rel (0) target = $region21
    $region20: #{tpu_custom_call.1} parent=1 // pred_region
      %166 = vsyncadd [#allocation4], 0
      %s168 = sshll.u32 [#allocation7], 4
      %s169 = int_to_ptr.vmem [resolvable:$true] %s168
      %s170 = sshll.u32 %s2, 4
      %s171 = int_to_ptr.hbm [resolvable:$true] %s170
      %173 = dma.vmem_to_hbm [thread:$0]  %s169, 128, %s171, [#allocation4]
    $region21: #{tpu_custom_call.1} parent=1 // pred_fallthru
      _
    // Predicated region
    $region22: #{tpu_custom_call.1} parent=1 // pred_check
      _
    $region23: #{tpu_custom_call.1} parent=1 // pred_check_branch
      %175 = sbr.rel (0) target = $region25
    $region24: #{tpu_custom_call.1} parent=1 // pred_region
      %177 = dma.done [#allocation4], 128
    $region25: #{tpu_custom_call.1} parent=1 // pred_fallthru
      _
    %178 = vsyncpa [#allocation3], 1
    %179 = vsyncpa [#allocation6], 1
    %180 = vsyncpa [#allocation4], 1

</llo_original>
